<compile_context>
chip_gen: v7x
topology: tpu7x:2x2x1
jax: 0.10.0
libtpu: 0.0.40
codegen_flags: <defaults>
</compile_context>

<pallas_src>
import functools

import jax
import jax.numpy as jnp
from jax import lax
from jax.experimental import pallas as pl
from jax.experimental.pallas import tpu as pltpu


def _max_marginals_kernel(o_ref, t_ref, res_ref,
                          dots_acc, diag_acc, osq_acc, tsq_acc,
                          *, lam, eps):
    d = pl.program_id(0)

    @pl.when(d == 0)
    def _init():
        dots_acc[...] = jnp.zeros_like(dots_acc)
        diag_acc[...] = jnp.zeros_like(diag_acc)
        osq_acc[...] = jnp.zeros_like(osq_acc)
        tsq_acc[...] = jnp.zeros_like(tsq_acc)

    o = o_ref[...]  # (B, tD) in storage dtype (bf16 or f32)
    t = t_ref[...]  # (B, tD)

    # Pairwise partial dot products on the MXU, default precision, f32 acc.
    dots_acc[...] += lax.dot_general(
        o, t,
        dimension_numbers=(((1,), (1,)), ((), ())),
        preferred_element_type=jnp.float32,
    )

    # Norms / diagonal dot: f32 elementwise (VPU), accumulated across D tiles.
    of = o.astype(jnp.float32)
    tf = t.astype(jnp.float32)
    diag_acc[...] += jnp.sum(of * tf, axis=-1, keepdims=True)   # (B, 1)
    osq_acc[...] += jnp.sum(of * of, axis=-1, keepdims=True)    # (B, 1)
    tsq_acc[...] += jnp.sum(tf * tf, axis=-1, keepdims=True)    # (B, 1)

    @pl.when(d == pl.num_programs(0) - 1)
    def _finalize():
        B = dots_acc.shape[0]

        o_norm = jnp.sqrt(osq_acc[...])   # (B, 1)
        t_norm = jnp.sqrt(tsq_acc[...])   # (B, 1)

        # Positive marginal: exact torch cosine_similarity eps semantics.
        cos_diag = diag_acc[...] / jnp.maximum(o_norm * t_norm, eps)  # (B, 1)
        positive = 1.0 - cos_diag                                     # (B, 1)

        if B > 1:
            inv_o = 1.0 / jnp.maximum(o_norm, eps)  # (B, 1)
            inv_t = 1.0 / jnp.maximum(t_norm, eps)  # (B, 1)
            # sum_j cos[i, j] = (1/||o_i||) * sum_j dots[i, j] / ||t_j||
            # Tiny (B,B)x(B,1) matvec: HIGHEST precision here is O(B^2), free.
            row_sum_cos = inv_o * lax.dot_general(
                dots_acc[...], inv_t,
                dimension_numbers=(((1,), (0,)), ((), ())),
                preferred_element_type=jnp.float32,
                precision=lax.Precision.HIGHEST,
            )                                                         # (B, 1)
            off_diag_dissim = (B - 1.0) - (row_sum_cos - cos_diag)
            negative = -(lam / (B - 1.0)) * off_diag_dissim
        else:
            negative = jnp.zeros_like(positive)

        loss = positive + negative
        # Lane-dense stacked output: row 0 = loss, 1 = positive, 2 = negative.
        res_ref[...] = jnp.stack(
            [loss[:, 0], positive[:, 0], negative[:, 0]], axis=0)  # (3, B)


def max_marginals_loss(outputs: jax.Array, targets: jax.Array,
                       lam: float = 1.0, *, block_d: int = 512):
    """Forward pass of MaxMarginalsLoss (mask=None path)."""
    # TODO(synk): the PyTorch `mask` path uses dynamic nonzero() gather/scatter
    # (data-dependent shapes); no clean static-shape Pallas equivalent, so only
    # the mask=None path is implemented.
    assert block_d % 128 == 0
    B, D = outputs.shape
    assert targets.shape == (B, D)

    if D <= block_d:
        tD = D                      # single D tile == full array dim (allowed)
    else:
        tD = block_d
        d_pad = (-D) % block_d      # zero-pad D so tiles are 128-aligned;
        if d_pad:                   # zeros contribute nothing to dots/norms.
            outputs = jnp.pad(outputs, ((0, 0), (0, d_pad)))
            targets = jnp.pad(targets, ((0, 0), (0, d_pad)))
    n_d = outputs.shape[1] // tD

    stacked = pl.pallas_call(
        functools.partial(_max_marginals_kernel, lam=float(lam), eps=1e-8),
        out_shape=jax.ShapeDtypeStruct((3, B), jnp.float32),
        grid_spec=pltpu.PrefetchScalarGridSpec(
            num_scalar_prefetch=0,
            grid=(n_d,),
            in_specs=[pl.BlockSpec((B, tD), lambda d: (0, d)),
                      pl.BlockSpec((B, tD), lambda d: (0, d))],
            out_specs=pl.BlockSpec((3, B), lambda d: (0, 0)),
            scratch_shapes=[
                pltpu.VMEM((B, B), jnp.float32),   # pairwise dot accumulator
                pltpu.VMEM((B, 1), jnp.float32),   # diag <o_i, t_i>
                pltpu.VMEM((B, 1), jnp.float32),   # ||o_i||^2
                pltpu.VMEM((B, 1), jnp.float32),   # ||t_j||^2
            ]),
        compiler_params=pltpu.CompilerParams(
            dimension_semantics=("arbitrary",)),
    )(outputs, targets)

    return {
        "loss": stacked[0],
        "marginals_positive": stacked[1],
        "marginals_negative": stacked[2],
    }


# ----------------------------------------------------------------------------
# Pure-JAX reference that mirrors the PyTorch forward (explicit roll loop).
# ----------------------------------------------------------------------------
def _cos_dist(a, b):
    num = jnp.sum(a * b, axis=-1)
    den = jnp.maximum(
        jnp.linalg.norm(a, axis=-1) * jnp.linalg.norm(b, axis=-1), 1e-8)
    return 1.0 - num / den


def reference_forward(outputs, targets, lam):
    B = outputs.shape[0]
    positive = _cos_dist(outputs, targets)
    negative = jnp.zeros_like(positive)
    if B > 1:
        for s in range(1, B):
            negative = negative - _cos_dist(outputs, jnp.roll(targets, s, axis=0))
        negative = negative / (B - 1) * lam
    loss = positive + negative
    return loss, positive, negative


def _check(outputs, targets, lam, **kw):
    res = max_marginals_loss(outputs, targets, lam=lam, **kw)
    jax.block_until_ready(res)
    ref_loss, ref_pos, ref_neg = reference_forward(outputs, targets, lam)
    # Main matmul runs at DEFAULT MXU precision (bf16 passes, f32 accumulate),
    # so allow a slightly looser tolerance than pure-f32.
    assert jnp.allclose(res["loss"], ref_loss, atol=2e-3, rtol=2e-3)
    assert jnp.allclose(res["marginals_positive"], ref_pos, atol=2e-3, rtol=2e-3)
    assert jnp.allclose(res["marginals_negative"], ref_neg, atol=2e-3, rtol=2e-3)


if __name__ == "__main__":
    key = jax.random.PRNGKey(0)
    k1, k2, k3, k4 = jax.random.split(key, 4)

    # Case 1: small, single D tile (tD == D).
    B, D, lam = 8, 32, 0.5
    o1 = jax.random.normal(k1, (B, D), dtype=jnp.float32)
    t1 = jax.random.normal(k2, (B, D), dtype=jnp.float32)
    _check(o1, t1, lam)

    # Case 2: D > block_d, exercises the tiled reduction grid + zero padding.
    B2, D2 = 16, 200
    o2 = jax.random.normal(k3, (B2, D2), dtype=jnp.float32)
    t2 = jax.random.normal(k4, (B2, D2), dtype=jnp.float32)
    _check(o2, t2, 1.0, block_d=128)

    print("KERNEL_OK")
</pallas_src>

<mosaic_0001>
module attributes {stable_mosaic.version = 11 : i64} {
  func.func @_max_marginals_kernel(%arg0: i32, %arg1: memref<8x32xf32, #tpu.memory_space<vmem>>, %arg2: memref<8x32xf32, #tpu.memory_space<vmem>>, %arg3: memref<3x8xf32, #tpu.memory_space<vmem>>, %arg4: memref<8x8xf32, #tpu.memory_space<vmem>>, %arg5: memref<8x1xf32, #tpu.memory_space<vmem>>, %arg6: memref<8x1xf32, #tpu.memory_space<vmem>>, %arg7: memref<8x1xf32, #tpu.memory_space<vmem>>) attributes {dimension_semantics = [#tpu.dimension_semantics<arbitrary>], iteration_bounds = array<i64: 1>, scalar_prefetch = 0 : i64, scratch_operands = 4 : i64, tpu.core_type = #tpu.core_type<tc>, window_params = [{transform_indices = @transform_0, window_bounds = array<i64: 8, 32>}, {transform_indices = @transform_1, window_bounds = array<i64: 8, 32>}, {pipeline_mode = #tpu.pipeline_mode<synchronous>, transform_indices = @transform_2, window_bounds = array<i64: 3, 8>}]} {
    %c0_i32 = arith.constant 0 : i32
    %0 = arith.cmpi eq, %arg0, %c0_i32 : i32
    %1 = arith.extui %0 : i1 to i32
    %c0_i32_0 = arith.constant 0 : i32
    %2 = arith.cmpi ne, %1, %c0_i32_0 : i32
    scf.if %2 {
      %cst_25 = arith.constant 0.000000e+00 : f32
      %30 = vector.broadcast %cst_25 : f32 to vector<8x8xf32>
      %c0_26 = arith.constant 0 : index
      %c0_27 = arith.constant 0 : index
      %31 = vector.load %arg4[%c0_26, %c0_27] : memref<8x8xf32, #tpu.memory_space<vmem>>, vector<8x8xf32>
      tpu.vector_store %arg4[%c0_26, %c0_27], %30 {strides = array<i32>} : memref<8x8xf32, #tpu.memory_space<vmem>>, vector<8x8xf32>,
      %cst_28 = arith.constant 0.000000e+00 : f32
      %32 = vector.broadcast %cst_28 : f32 to vector<8x1xf32>
      %c0_29 = arith.constant 0 : index
      %c0_30 = arith.constant 0 : index
      %33 = vector.load %arg5[%c0_29, %c0_30] : memref<8x1xf32, #tpu.memory_space<vmem>>, vector<8x1xf32>
      tpu.vector_store %arg5[%c0_29, %c0_30], %32 {strides = array<i32>} : memref<8x1xf32, #tpu.memory_space<vmem>>, vector<8x1xf32>,
      %cst_31 = arith.constant 0.000000e+00 : f32
      %34 = vector.broadcast %cst_31 : f32 to vector<8x1xf32>
      %c0_32 = arith.constant 0 : index
      %c0_33 = arith.constant 0 : index
      %35 = vector.load %arg6[%c0_32, %c0_33] : memref<8x1xf32, #tpu.memory_space<vmem>>, vector<8x1xf32>
      tpu.vector_store %arg6[%c0_32, %c0_33], %34 {strides = array<i32>} : memref<8x1xf32, #tpu.memory_space<vmem>>, vector<8x1xf32>,
      %cst_34 = arith.constant 0.000000e+00 : f32
      %36 = vector.broadcast %cst_34 : f32 to vector<8x1xf32>
      %c0_35 = arith.constant 0 : index
      %c0_36 = arith.constant 0 : index
      %37 = vector.load %arg7[%c0_35, %c0_36] : memref<8x1xf32, #tpu.memory_space<vmem>>, vector<8x1xf32>
      tpu.vector_store %arg7[%c0_35, %c0_36], %36 {strides = array<i32>} : memref<8x1xf32, #tpu.memory_space<vmem>>, vector<8x1xf32>,
    } else {
    }
    %c0 = arith.constant 0 : index
    %c0_1 = arith.constant 0 : index
    %3 = vector.load %arg1[%c0, %c0_1] : memref<8x32xf32, #tpu.memory_space<vmem>>, vector<8x32xf32>
    %c0_2 = arith.constant 0 : index
    %c0_3 = arith.constant 0 : index
    %4 = vector.load %arg2[%c0_2, %c0_3] : memref<8x32xf32, #tpu.memory_space<vmem>>, vector<8x32xf32>
    %c0_4 = arith.constant 0 : index
    %c0_5 = arith.constant 0 : index
    %5 = vector.load %arg4[%c0_4, %c0_5] : memref<8x8xf32, #tpu.memory_space<vmem>>, vector<8x8xf32>
    %cst = arith.constant dense<0.000000e+00> : vector<8x8xf32>
    %6 = tpu.matmul %3, %4, %cst {dimension_numbers = #tpu.dot_dimension_numbers<[1], [1], [0], [0], [0, 0, 1, 0], [], []>} : vector<8x32xf32>, vector<8x32xf32>, vector<8x8xf32> -> vector<8x8xf32>
    %7 = arith.addf %5, %6 : vector<8x8xf32>
    %c0_6 = arith.constant 0 : index
    %c0_7 = arith.constant 0 : index
    %8 = vector.load %arg4[%c0_6, %c0_7] : memref<8x8xf32, #tpu.memory_space<vmem>>, vector<8x8xf32>
    tpu.vector_store %arg4[%c0_6, %c0_7], %7 {strides = array<i32>} : memref<8x8xf32, #tpu.memory_space<vmem>>, vector<8x8xf32>,
    %c0_8 = arith.constant 0 : index
    %c0_9 = arith.constant 0 : index
    %9 = vector.load %arg5[%c0_8, %c0_9] : memref<8x1xf32, #tpu.memory_space<vmem>>, vector<8x1xf32>
    %10 = arith.mulf %3, %4 : vector<8x32xf32>
    %cst_10 = arith.constant dense<0.000000e+00> : vector<8xf32>
    %11 = vector.multi_reduction <add>, %10, %cst_10 [1] : vector<8x32xf32> to vector<8xf32>
    %12 = vector.shape_cast %11 : vector<8xf32> to vector<8x1xf32>
    %13 = arith.addf %9, %12 : vector<8x1xf32>
    %c0_11 = arith.constant 0 : index
    %c0_12 = arith.constant 0 : index
    %14 = vector.load %arg5[%c0_11, %c0_12] : memref<8x1xf32, #tpu.memory_space<vmem>>, vector<8x1xf32>
    tpu.vector_store %arg5[%c0_11, %c0_12], %13 {strides = array<i32>} : memref<8x1xf32, #tpu.memory_space<vmem>>, vector<8x1xf32>,
    %c0_13 = arith.constant 0 : index
    %c0_14 = arith.constant 0 : index
    %15 = vector.load %arg6[%c0_13, %c0_14] : memref<8x1xf32, #tpu.memory_space<vmem>>, vector<8x1xf32>
    %16 = arith.mulf %3, %3 : vector<8x32xf32>
    %cst_15 = arith.constant dense<0.000000e+00> : vector<8xf32>
    %17 = vector.multi_reduction <add>, %16, %cst_15 [1] : vector<8x32xf32> to vector<8xf32>
    %18 = vector.shape_cast %17 : vector<8xf32> to vector<8x1xf32>
    %19 = arith.addf %15, %18 : vector<8x1xf32>
    %c0_16 = arith.constant 0 : index
    %c0_17 = arith.constant 0 : index
    %20 = vector.load %arg6[%c0_16, %c0_17] : memref<8x1xf32, #tpu.memory_space<vmem>>, vector<8x1xf32>
    tpu.vector_store %arg6[%c0_16, %c0_17], %19 {strides = array<i32>} : memref<8x1xf32, #tpu.memory_space<vmem>>, vector<8x1xf32>,
    %c0_18 = arith.constant 0 : index
    %c0_19 = arith.constant 0 : index
    %21 = vector.load %arg7[%c0_18, %c0_19] : memref<8x1xf32, #tpu.memory_space<vmem>>, vector<8x1xf32>
    %22 = arith.mulf %4, %4 : vector<8x32xf32>
    %cst_20 = arith.constant dense<0.000000e+00> : vector<8xf32>
    %23 = vector.multi_reduction <add>, %22, %cst_20 [1] : vector<8x32xf32> to vector<8xf32>
    %24 = vector.shape_cast %23 : vector<8xf32> to vector<8x1xf32>
    %25 = arith.addf %21, %24 : vector<8x1xf32>
    %c0_21 = arith.constant 0 : index
    %c0_22 = arith.constant 0 : index
    %26 = vector.load %arg7[%c0_21, %c0_22] : memref<8x1xf32, #tpu.memory_space<vmem>>, vector<8x1xf32>
    tpu.vector_store %arg7[%c0_21, %c0_22], %25 {strides = array<i32>} : memref<8x1xf32, #tpu.memory_space<vmem>>, vector<8x1xf32>,
    %c0_i32_23 = arith.constant 0 : i32
    %27 = arith.cmpi eq, %arg0, %c0_i32_23 : i32
    %28 = arith.extui %27 : i1 to i32
    %c0_i32_24 = arith.constant 0 : i32
    %29 = arith.cmpi ne, %28, %c0_i32_24 : i32
    scf.if %29 {
      %c0_25 = arith.constant 0 : index
      %c0_26 = arith.constant 0 : index
      %30 = vector.load %arg6[%c0_25, %c0_26] : memref<8x1xf32, #tpu.memory_space<vmem>>, vector<8x1xf32>
      %31 = math.sqrt %30 : vector<8x1xf32>
      %c0_27 = arith.constant 0 : index
      %c0_28 = arith.constant 0 : index
      %32 = vector.load %arg7[%c0_27, %c0_28] : memref<8x1xf32, #tpu.memory_space<vmem>>, vector<8x1xf32>
      %33 = math.sqrt %32 : vector<8x1xf32>
      %c0_29 = arith.constant 0 : index
      %c0_30 = arith.constant 0 : index
      %34 = vector.load %arg5[%c0_29, %c0_30] : memref<8x1xf32, #tpu.memory_space<vmem>>, vector<8x1xf32>
      %35 = arith.mulf %31, %33 : vector<8x1xf32>
      %cst_31 = arith.constant 9.99999993E-9 : f32
      %36 = vector.broadcast %cst_31 : f32 to vector<8x1xf32>
      %37 = arith.maximumf %35, %36 : vector<8x1xf32>
      %38 = arith.divf %34, %37 : vector<8x1xf32>
      %cst_32 = arith.constant 1.000000e+00 : f32
      %39 = vector.broadcast %cst_32 : f32 to vector<8x1xf32>
      %40 = arith.subf %39, %38 : vector<8x1xf32>
      %cst_33 = arith.constant 9.99999993E-9 : f32
      %41 = vector.broadcast %cst_33 : f32 to vector<8x1xf32>
      %42 = arith.maximumf %31, %41 : vector<8x1xf32>
      %cst_34 = arith.constant 1.000000e+00 : f32
      %43 = vector.broadcast %cst_34 : f32 to vector<8x1xf32>
      %44 = arith.divf %43, %42 : vector<8x1xf32>
      %cst_35 = arith.constant 9.99999993E-9 : f32
      %45 = vector.broadcast %cst_35 : f32 to vector<8x1xf32>
      %46 = arith.maximumf %33, %45 : vector<8x1xf32>
      %cst_36 = arith.constant 1.000000e+00 : f32
      %47 = vector.broadcast %cst_36 : f32 to vector<8x1xf32>
      %48 = arith.divf %47, %46 : vector<8x1xf32>
      %c0_37 = arith.constant 0 : index
      %c0_38 = arith.constant 0 : index
      %49 = vector.load %arg4[%c0_37, %c0_38] : memref<8x8xf32, #tpu.memory_space<vmem>>, vector<8x8xf32>
      %cst_39 = arith.constant dense<0.000000e+00> : vector<8x1xf32>
      %50 = tpu.matmul %49, %48, %cst_39 {dimension_numbers = #tpu.dot_dimension_numbers<[1], [0], [0], [1], [0, 0, 1, 1], [], []>, precision = #tpu.contract_precision<fp32>} : vector<8x8xf32>, vector<8x1xf32>, vector<8x1xf32> -> vector<8x1xf32>
      %51 = arith.mulf %44, %50 : vector<8x1xf32>
      %52 = arith.subf %51, %38 : vector<8x1xf32>
      %cst_40 = arith.constant 7.000000e+00 : f32
      %53 = vector.broadcast %cst_40 : f32 to vector<8x1xf32>
      %54 = arith.subf %53, %52 : vector<8x1xf32>
      %cst_41 = arith.constant -0.0714285746 : f32
      %55 = vector.broadcast %cst_41 : f32 to vector<8x1xf32>
      %56 = arith.mulf %55, %54 : vector<8x1xf32>
      %57 = arith.addf %40, %56 : vector<8x1xf32>
      %58 = vector.shape_cast %57 : vector<8x1xf32> to vector<8xf32>
      %59 = vector.shape_cast %40 : vector<8x1xf32> to vector<8xf32>
      %60 = vector.shape_cast %56 : vector<8x1xf32> to vector<8xf32>
      %61 = vector.shape_cast %58 : vector<8xf32> to vector<1x8xf32>
      %62 = vector.shape_cast %59 : vector<8xf32> to vector<1x8xf32>
      %63 = vector.shape_cast %60 : vector<8xf32> to vector<1x8xf32>
      %64 = tpu.concatenate %61, %62, %63 in 0 : vector<1x8xf32>, vector<1x8xf32>, vector<1x8xf32> -> vector<3x8xf32>
      %c0_42 = arith.constant 0 : index
      %c0_43 = arith.constant 0 : index
      %65 = vector.load %arg3[%c0_42, %c0_43] : memref<3x8xf32, #tpu.memory_space<vmem>>, vector<3x8xf32>
      tpu.vector_store %arg3[%c0_42, %c0_43], %64 {strides = array<i32>} : memref<3x8xf32, #tpu.memory_space<vmem>>, vector<3x8xf32>,
    } else {
    }
    return
  }
  func.func @transform_0(%arg0: i32) -> (i32, i32) {
    %c0_i32 = arith.constant 0 : i32
    %c0_i32_0 = arith.constant 0 : i32
    return %c0_i32, %arg0 : i32, i32
  }
  func.func @transform_1(%arg0: i32) -> (i32, i32) {
    %c0_i32 = arith.constant 0 : i32
    %c0_i32_0 = arith.constant 0 : i32
    return %c0_i32, %arg0 : i32, i32
  }
  func.func @transform_2(%arg0: i32) -> (i32, i32) {
    %c0_i32 = arith.constant 0 : i32
    %c0_i32_0 = arith.constant 0 : i32
    %c0_i32_1 = arith.constant 0 : i32
    return %c0_i32, %c0_i32_0 : i32, i32
  }
}

</mosaic_0001>

<llo_original>
// kernel: tpu_custom_call.1
$region0: #{tpu_custom_call.1}
  #allocation0 [shape = 'u32[]', space=smem, size = 0x4, offset = 0x4, fixed_abs, tag = 'smem constant byte address 0x4 - core index']
  #allocation1 [shape = 'u32[144,128]{1,0:T(1,128)}', space=vmem, size = 0x12000, scoped, tag = 'internal scratch']
  #allocation2 [shape = 'f32[8,8]{1,0:T(8,128)}', space=vmem, size = 0x1000, scoped, tag = 'scratch operand']
  #allocation3 [shape = 'f32[8,1]{1,0:T(8,128)}', space=vmem, size = 0x1000, scoped, tag = 'scratch operand']
  #allocation4 [shape = 'f32[8,1]{1,0:T(8,128)}', space=vmem, size = 0x1000, scoped, tag = 'scratch operand']
  #allocation5 [shape = 'f32[8,1]{1,0:T(8,128)}', space=vmem, size = 0x1000, scoped, tag = 'scratch operand']
  %s0 = inlined_call_operand.hbm [shape: f32[8,32], index: 0, kind: input, shape index: {}]
  %s1 = inlined_call_operand.hbm [shape: f32[8,32], index: 1, kind: input, shape index: {}]
  %s2 = inlined_call_operand.hbm [shape: f32[3,8], index: 2, kind: output, shape index: {}]
  %s3 = sld [smem:[#allocation0]]
  $region34: #{tpu_custom_call.1} parent=0
    _
  %s5 = ssub.s32 1, %s3
  %s6 = scalar_select 0, %s5, %s3
  $region1: #{tpu_custom_call.1} parent=0
    #allocation6 [shape = 'u8[4096]{0}', space=vmem, size = 0x1000, scoped, tag = 'input window, operand 0, single buffered']
    #allocation7 [shape = 's32[1]{0}', space=sflag, size = 0x4, scoped, tag = 'scoped memory for tpu_custom_call.1']
    #allocation8 [shape = 's32[1]{0}', space=sflag, size = 0x4, scoped, tag = 'scoped memory for tpu_custom_call.1']
    #allocation9 [shape = 'u8[4096]{0}', space=vmem, size = 0x1000, scoped, tag = 'input window, operand 1, single buffered']
    #allocation10 [shape = 's32[1]{0}', space=sflag, size = 0x4, scoped, tag = 'scoped memory for tpu_custom_call.1']
    #allocation11 [shape = 'u8[2048]{0}', space=vmem, size = 0x800, scoped, tag = 'output window, operand 0, single buffered']
    %7 = vsyncpa [#allocation7], 0
    %8 = vsyncpa [#allocation10], 0
    %9 = vsyncpa [#allocation8], 0
    // Predicated region
    $region2: #{tpu_custom_call.1} parent=1 // pred_check
      _
    $region3: #{tpu_custom_call.1} parent=1 // pred_check_branch
      %11 = sbr.rel (0) target = $region5
    $region4: #{tpu_custom_call.1} parent=1 // pred_region
      %s13 = ssub.s32 128, 128
      %14 = vsyncadd [#allocation7], %s13
      %s16 = sshll.u32 [#allocation6], 4
      %s17 = int_to_ptr.vmem [resolvable:$true] %s16
      %19 = dma.hbm_to_vmem [thread:$0]  %s0, 128, %s17, [#allocation7]
    $region5: #{tpu_custom_call.1} parent=1 // pred_fallthru
      _
    // Predicated region
    $region6: #{tpu_custom_call.1} parent=1 // pred_check
      _
    $region7: #{tpu_custom_call.1} parent=1 // pred_check_branch
      %21 = sbr.rel (0) target = $region9
    $region8: #{tpu_custom_call.1} parent=1 // pred_region
      %s23 = ssub.s32 128, 128
      %24 = vsyncadd [#allocation10], %s23
      %s26 = sshll.u32 [#allocation9], 4
      %s27 = int_to_ptr.vmem [resolvable:$true] %s26
      %29 = dma.hbm_to_vmem [thread:$0]  %s1, 128, %s27, [#allocation10]
    $region9: #{tpu_custom_call.1} parent=1 // pred_fallthru
      _
    // Predicated region
    $region10: #{tpu_custom_call.1} parent=1 // pred_check
      _
    $region11: #{tpu_custom_call.1} parent=1 // pred_check_branch
      %31 = sbr.rel (0) target = $region13
    $region12: #{tpu_custom_call.1} parent=1 // pred_region
      %32 = dma.done [#allocation7], 128
    $region13: #{tpu_custom_call.1} parent=1 // pred_fallthru
      _
    // Predicated region
    $region14: #{tpu_custom_call.1} parent=1 // pred_check
      _
    $region15: #{tpu_custom_call.1} parent=1 // pred_check_branch
      %34 = sbr.rel (0) target = $region17
    $region16: #{tpu_custom_call.1} parent=1 // pred_region
      %35 = dma.done [#allocation10], 128
    $region17: #{tpu_custom_call.1} parent=1 // pred_fallthru
      _
    %p36 = scmp.eq.s32.totalorder 0, 0
    // Predicated region
    $region18: #{tpu_custom_call.1} parent=1 // pred_check
      %p37 = pneg %p36
    $region19: #{tpu_custom_call.1} parent=1 // pred_check_branch
      %39 = sbr.rel (%p37) target = $region21
    $region20: #{tpu_custom_call.1} parent=1 // pred_region
      %vm40 = vcmask 64512
      %41 = vst.msk [vmem:[#allocation2] sm:$0xff] %vm40, 0.0
      %vm42 = vcmask 7168
      %43 = vst.msk [vmem:[#allocation3] sm:$0xff] %vm42, 0.0
      %44 = vst.msk [vmem:[#allocation4] sm:$0xff] %vm42, 0.0
      %45 = vst.msk [vmem:[#allocation5] sm:$0xff] %vm42, 0.0
    $region21: #{tpu_custom_call.1} parent=1 // pred_fallthru
      _
    %v46 = vld [vmem:[#allocation6] sm:$0xff]
    %v47 = vld [vmem:[#allocation9] sm:$0xff]
    %v48 = vld [vmem:[#allocation2] sm:$0xff]
    %vm49 = vcmask 261120
    %v51 = vsel %vm49, %v46, 0
    %v54 = vsel %vm49, %v47, 0
    %56 = vmatprep.subr.mxu0 0.0
    %57 = vmatpush1.xpose.msra.mxu0 %v54
    %58 = vmatprep.subr.mxu0 0.0
    %59 = vmatpush1.xpose.msra.mxu0 0.0
    %60 = vmatprep.subr.mxu0 0.0
    %61 = vmatpush1.xpose.msra.mxu0 0.0
    %62 = vmatprep.subr.mxu0 0.0
    %63 = vmatpush1.xpose.msra.mxu0 0.0
    %64 = vmatprep.subr.mxu0 0.0
    %65 = vmatpush1.xpose.msra.mxu0 0.0
    %66 = vmatprep.subr.mxu0 0.0
    %67 = vmatpush1.xpose.msra.mxu0 0.0
    %68 = vmatprep.subr.mxu0 0.0
    %69 = vmatpush1.xpose.msra.mxu0 0.0
    %70 = vmatprep.subr.mxu0 0.0
    %71 = vmatpush1.xpose.msra.mxu0 0.0
    %72 = vmatprep.subr.mxu0 0.0
    %73 = vmatpush1.xpose.msra.mxu0 0.0
    %74 = vmatprep.subr.mxu0 0.0
    %75 = vmatpush1.xpose.msra.mxu0 0.0
    %76 = vmatprep.subr.mxu0 0.0
    %77 = vmatpush1.xpose.msra.mxu0 0.0
    %78 = vmatprep.subr.mxu0 0.0
    %79 = vmatpush1.xpose.msra.mxu0 0.0
    %80 = vmatprep.subr.mxu0 0.0
    %81 = vmatpush1.xpose.msra.mxu0 0.0
    %82 = vmatprep.subr.mxu0 0.0
    %83 = vmatpush1.xpose.msra.mxu0 0.0
    %84 = vmatprep.subr.mxu0 0.0
    %85 = vmatpush1.xpose.msra.mxu0 0.0
    %86 = vmatprep.subr.mxu0 0.0
    %87 = vmatpush1.xpose.msra.mxu0 0.0
    %88 = vmatprep.subr.mxu0 0.0
    %89 = vmatpush1.xpose.msra.mxu0 0.0
    %90 = vmatprep.subr.mxu0 0.0
    %91 = vmatpush1.xpose.msra.mxu0 0.0
    %92 = vmatprep.subr.mxu0 0.0
    %93 = vmatpush1.xpose.msra.mxu0 0.0
    %94 = vmatprep.subr.mxu0 0.0
    %95 = vmatpush1.xpose.msra.mxu0 0.0
    %96 = vmatprep.subr.mxu0 0.0
    %97 = vmatpush1.xpose.msra.mxu0 0.0
    %98 = vmatprep.subr.mxu0 0.0
    %99 = vmatpush1.xpose.msra.mxu0 0.0
    %100 = vmatprep.subr.mxu0 0.0
    %101 = vmatpush1.xpose.msra.mxu0 0.0
    %102 = vmatprep.subr.mxu0 0.0
    %103 = vmatpush1.xpose.msra.mxu0 0.0
    %104 = vmatprep.subr.mxu0 0.0
    %105 = vmatpush1.xpose.msra.mxu0 0.0
    %106 = vmatprep.subr.mxu0 0.0
    %107 = vmatpush1.xpose.msra.mxu0 0.0
    %108 = vmatprep.subr.mxu0 0.0
    %109 = vmatpush1.xpose.msra.mxu0 0.0
    %110 = vmatprep.subr.mxu0 0.0
    %111 = vmatpush1.xpose.msra.mxu0 0.0
    %112 = vmatprep.subr.mxu0 0.0
    %113 = vmatpush1.xpose.msra.mxu0 0.0
    %114 = vmatprep.subr.mxu0 0.0
    %115 = vmatpush1.xpose.msra.mxu0 0.0
    %116 = vmatprep.subr.mxu0 0.0
    %117 = vmatpush1.xpose.msra.mxu0 0.0
    %118 = vmatprep.subr.mxu0 0.0
    %119 = vmatpush1.xpose.msra.mxu0 0.0
    %120 = vmatprep.mubr.f32.mxu0 0.0
    %121 = vmatmul.mubr.f32.gmra.mrb[0].mxu0 %v51
    %v122 = vpop.f32.mrb[0].mxu0
    %v123 = vadd.f32 0.0, %v122
    %v124 = vpop.f32.mrb[0].mxu0
    %125 = vdwg.mxu0
    %v126 = vadd.f32 %v48, %v123
    %vm127 = vcmask 64512
    %128 = vst.msk [vmem:[#allocation2] sm:$0xff] %vm127, %v126
    %v129 = vld [vmem:[#allocation3] sm:$0xff]
    %v130 = vmul.f32 %v46, %v47
    %v131 = vsel %vm49, %v130, 0.0
    %132 = vadd.xlane.f32.xlu0 %v131
    %v133 = vpop.xlane.xlu0 %132
    %v134 = vadd.f32 %v129, %v133
    %vm135 = vcmask 7168
    %136 = vst.msk [vmem:[#allocation3] sm:$0xff] %vm135, %v134
    %v137 = vld [vmem:[#allocation4] sm:$0xff]
    %v138 = vmul.f32 %v46, %v46
    %v139 = vsel %vm49, %v138, 0.0
    %140 = vadd.xlane.f32.xlu0 %v139
    %v141 = vpop.xlane.xlu0 %140
    %v142 = vadd.f32 %v137, %v141
    %143 = vst.msk [vmem:[#allocation4] sm:$0xff] %vm135, %v142
    %v144 = vld [vmem:[#allocation5] sm:$0xff]
    %v145 = vmul.f32 %v47, %v47
    %v146 = vsel %vm49, %v145, 0.0
    %147 = vadd.xlane.f32.xlu0 %v146
    %v148 = vpop.xlane.xlu0 %147
    %v149 = vadd.f32 %v144, %v148
    %150 = vst.msk [vmem:[#allocation5] sm:$0xff] %vm135, %v149
    // Predicated region
    $region22: #{tpu_custom_call.1} parent=1 // pred_check
      %p151 = pneg %p36
    $region23: #{tpu_custom_call.1} parent=1 // pred_check_branch
      %153 = sbr.rel (%p151) target = $region25
    $region24: #{tpu_custom_call.1} parent=1 // pred_region
      %v154 = vld [vmem:[#allocation4] sm:$0xff]
      %v155 = vrsqrt.pop %v154
      %v156 = vmul.f32 %v154, %v155
      %vm157 = vcmp.eq.f32.partialorder %v154, inf
      %v158 = vsel %vm157, %v154, %v156
      %vm159 = vcmp.eq.f32.partialorder %v154, 0.0
      %v160 = vand.u32 %v154, 2147483648
      %v161 = vsel %vm159, %v160, %v158
      %v162 = vld [vmem:[#allocation5] sm:$0xff]
      %v163 = vrsqrt.pop %v162
      %v164 = vmul.f32 %v162, %v163
      %vm165 = vcmp.eq.f32.partialorder %v162, inf
      %v166 = vsel %vm165, %v162, %v164
      %vm167 = vcmp.eq.f32.partialorder %v162, 0.0
      %v168 = vand.u32 %v162, 2147483648
      %v169 = vsel %vm167, %v168, %v166
      %v170 = vld [vmem:[#allocation3] sm:$0xff]
      %v171 = vmul.f32 %v161, %v169
      %v172 = vmax.f32 %v171, 1e-08
      %v173 = vrcp.pop %v172
      %v174 = vmul.f32 %v170, %v173
      %v175 = vsub.f32 1.0, %v174
      %v176 = vmax.f32 %v161, 1e-08
      %v177 = vrcp.pop %v176
      %v178 = vmul.f32 1.0, %v177
      %v179 = vmax.f32 %v169, 1e-08
      %v180 = vrcp.pop %v179
      %v181 = vmul.f32 1.0, %v180
      %v182 = vld [vmem:[#allocation2] sm:$0xff]
      %v184 = vsel %vm127, %v182, 0
      %186 = vmatprep.subr.mxu0 0.0
      %v187 = vand.u32 %v181, 4294901760
      %188 = vmatpush1.msra.mxu0 %v187
      %189 = vmatprep.subr.mxu0 0.0
      %190 = vmatpush1.msra.mxu0 0.0
      %191 = vmatprep.subr.mxu0 0.0
      %192 = vmatpush1.msra.mxu0 0.0
      %193 = vmatprep.subr.mxu0 0.0
      %194 = vmatpush1.msra.mxu0 0.0
      %195 = vmatprep.subr.mxu0 0.0
      %196 = vmatpush1.msra.mxu0 0.0
      %197 = vmatprep.subr.mxu0 0.0
      %198 = vmatpush1.msra.mxu0 0.0
      %199 = vmatprep.subr.mxu0 0.0
      %200 = vmatpush1.msra.mxu0 0.0
      %201 = vmatprep.subr.mxu0 0.0
      %202 = vmatpush1.msra.mxu0 0.0
      %203 = vmatprep.subr.mxu0 0.0
      %204 = vmatpush1.msra.mxu0 0.0
      %205 = vmatprep.subr.mxu0 0.0
      %206 = vmatpush1.msra.mxu0 0.0
      %207 = vmatprep.subr.mxu0 0.0
      %208 = vmatpush1.msra.mxu0 0.0
      %209 = vmatprep.subr.mxu0 0.0
      %210 = vmatpush1.msra.mxu0 0.0
      %211 = vmatprep.subr.mxu0 0.0
      %212 = vmatpush1.msra.mxu0 0.0
      %213 = vmatprep.subr.mxu0 0.0
      %214 = vmatpush1.msra.mxu0 0.0
      %215 = vmatprep.subr.mxu0 0.0
      %216 = vmatpush1.msra.mxu0 0.0
      %217 = vmatprep.subr.mxu0 0.0
      %218 = vmatpush1.msra.mxu0 0.0
      %219 = vmatprep.subr.mxu0 0.0
      %220 = vmatpush1.msra.mxu0 0.0
      %221 = vmatprep.subr.mxu0 0.0
      %222 = vmatpush1.msra.mxu0 0.0
      %223 = vmatprep.subr.mxu0 0.0
      %224 = vmatpush1.msra.mxu0 0.0
      %225 = vmatprep.subr.mxu0 0.0
      %226 = vmatpush1.msra.mxu0 0.0
      %227 = vmatprep.subr.mxu0 0.0
      %228 = vmatpush1.msra.mxu0 0.0
      %229 = vmatprep.subr.mxu0 0.0
      %230 = vmatpush1.msra.mxu0 0.0
      %231 = vmatprep.subr.mxu0 0.0
      %232 = vmatpush1.msra.mxu0 0.0
      %233 = vmatprep.subr.mxu0 0.0
      %234 = vmatpush1.msra.mxu0 0.0
      %235 = vmatprep.subr.mxu0 0.0
      %236 = vmatpush1.msra.mxu0 0.0
      %237 = vmatprep.subr.mxu0 0.0
      %238 = vmatpush1.msra.mxu0 0.0
      %239 = vmatprep.subr.mxu0 0.0
      %240 = vmatpush1.msra.mxu0 0.0
      %241 = vmatprep.subr.mxu0 0.0
      %242 = vmatpush1.msra.mxu0 0.0
      %243 = vmatprep.subr.mxu0 0.0
      %244 = vmatpush1.msra.mxu0 0.0
      %245 = vmatprep.subr.mxu0 0.0
      %246 = vmatpush1.msra.mxu0 0.0
      %247 = vmatprep.subr.mxu0 0.0
      %248 = vmatpush1.msra.mxu0 0.0
      %249 = vmatprep.subr.mxu0 0.0
      %250 = vmatpush1.msra.mxu0 0.0
      %251 = vmatprep.mubr.f32.mxu0 0.0
      %v252 = vand.u32 %v184, 4294901760
      %v253 = vsub.f32 %v184, %v252
      %v254 = vand.u32 %v253, 4294901760
      %v255 = vsub.f32 %v253, %v254
      %v256 = vand.u32 %v255, 4294901760
      %257 = vmatmul.mubr.f32.gmra.mrb[0].mxu0 %v256
      %v258 = vpop.f32.mrb[0].mxu0
      %v259 = vadd.f32 0.0, %v258
      %v260 = vpop.f32.mrb[0].mxu0
      %261 = vdwg.mxu0
      %262 = vmatprep.subr.mxu0 0.0
      %v263 = vand.u32 %v181, 4294901760
      %v264 = vsub.f32 %v181, %v263
      %v265 = vand.u32 %v264, 4294901760
      %v266 = vsub.f32 %v264, %v265
      %v267 = vand.u32 %v266, 4294901760
      %268 = vmatpush1.msra.mxu0 %v267
      %269 = vmatprep.subr.mxu0 0.0
      %270 = vmatpush1.msra.mxu0 0.0
      %271 = vmatprep.subr.mxu0 0.0
      %272 = vmatpush1.msra.mxu0 0.0
      %273 = vmatprep.subr.mxu0 0.0
      %274 = vmatpush1.msra.mxu0 0.0
      %275 = vmatprep.subr.mxu0 0.0
      %276 = vmatpush1.msra.mxu0 0.0
      %277 = vmatprep.subr.mxu0 0.0
      %278 = vmatpush1.msra.mxu0 0.0
      %279 = vmatprep.subr.mxu0 0.0
      %280 = vmatpush1.msra.mxu0 0.0
      %281 = vmatprep.subr.mxu0 0.0
      %282 = vmatpush1.msra.mxu0 0.0
      %283 = vmatprep.subr.mxu0 0.0
      %284 = vmatpush1.msra.mxu0 0.0
      %285 = vmatprep.subr.mxu0 0.0
      %286 = vmatpush1.msra.mxu0 0.0
      %287 = vmatprep.subr.mxu0 0.0
      %288 = vmatpush1.msra.mxu0 0.0
      %289 = vmatprep.subr.mxu0 0.0
      %290 = vmatpush1.msra.mxu0 0.0
      %291 = vmatprep.subr.mxu0 0.0
      %292 = vmatpush1.msra.mxu0 0.0
      %293 = vmatprep.subr.mxu0 0.0
      %294 = vmatpush1.msra.mxu0 0.0
      %295 = vmatprep.subr.mxu0 0.0
      %296 = vmatpush1.msra.mxu0 0.0
      %297 = vmatprep.subr.mxu0 0.0
      %298 = vmatpush1.msra.mxu0 0.0
      %299 = vmatprep.subr.mxu0 0.0
      %300 = vmatpush1.msra.mxu0 0.0
      %301 = vmatprep.subr.mxu0 0.0
      %302 = vmatpush1.msra.mxu0 0.0
      %303 = vmatprep.subr.mxu0 0.0
      %304 = vmatpush1.msra.mxu0 0.0
      %305 = vmatprep.subr.mxu0 0.0
      %306 = vmatpush1.msra.mxu0 0.0
      %307 = vmatprep.subr.mxu0 0.0
      %308 = vmatpush1.msra.mxu0 0.0
      %309 = vmatprep.subr.mxu0 0.0
      %310 = vmatpush1.msra.mxu0 0.0
      %311 = vmatprep.subr.mxu0 0.0
      %312 = vmatpush1.msra.mxu0 0.0
      %313 = vmatprep.subr.mxu0 0.0
      %314 = vmatpush1.msra.mxu0 0.0
      %315 = vmatprep.subr.mxu0 0.0
      %316 = vmatpush1.msra.mxu0 0.0
      %317 = vmatprep.subr.mxu0 0.0
      %318 = vmatpush1.msra.mxu0 0.0
      %319 = vmatprep.subr.mxu0 0.0
      %320 = vmatpush1.msra.mxu0 0.0
      %321 = vmatprep.subr.mxu0 0.0
      %322 = vmatpush1.msra.mxu0 0.0
      %323 = vmatprep.subr.mxu0 0.0
      %324 = vmatpush1.msra.mxu0 0.0
      %325 = vmatprep.subr.mxu0 0.0
      %326 = vmatpush1.msra.mxu0 0.0
      %327 = vmatprep.subr.mxu0 0.0
      %328 = vmatpush1.msra.mxu0 0.0
      %329 = vmatprep.subr.mxu0 0.0
      %330 = vmatpush1.msra.mxu0 0.0
      %331 = vmatprep.mubr.f32.mxu0 0.0
      %v332 = vand.u32 %v184, 4294901760
      %333 = vmatmul.mubr.f32.gmra.mrb[0].mxu0 %v332
      %v334 = vpop.f32.mrb[0].mxu0
      %v335 = vadd.f32 %v259, %v334
      %v336 = vpop.f32.mrb[0].mxu0
      %337 = vdwg.mxu0
      %338 = vmatprep.subr.mxu0 0.0
      %v339 = vand.u32 %v181, 4294901760
      %v340 = vsub.f32 %v181, %v339
      %341 = vmatpush1.msra.mxu0 %v340
      %342 = vmatprep.subr.mxu0 0.0
      %343 = vmatpush1.msra.mxu0 0.0
      %344 = vmatprep.subr.mxu0 0.0
      %345 = vmatpush1.msra.mxu0 0.0
      %346 = vmatprep.subr.mxu0 0.0
      %347 = vmatpush1.msra.mxu0 0.0
      %348 = vmatprep.subr.mxu0 0.0
      %349 = vmatpush1.msra.mxu0 0.0
      %350 = vmatprep.subr.mxu0 0.0
      %351 = vmatpush1.msra.mxu0 0.0
      %352 = vmatprep.subr.mxu0 0.0
      %353 = vmatpush1.msra.mxu0 0.0
      %354 = vmatprep.subr.mxu0 0.0
      %355 = vmatpush1.msra.mxu0 0.0
      %356 = vmatprep.subr.mxu0 0.0
      %357 = vmatpush1.msra.mxu0 0.0
      %358 = vmatprep.subr.mxu0 0.0
      %359 = vmatpush1.msra.mxu0 0.0
      %360 = vmatprep.subr.mxu0 0.0
      %361 = vmatpush1.msra.mxu0 0.0
      %362 = vmatprep.subr.mxu0 0.0
      %363 = vmatpush1.msra.mxu0 0.0
      %364 = vmatprep.subr.mxu0 0.0
      %365 = vmatpush1.msra.mxu0 0.0
      %366 = vmatprep.subr.mxu0 0.0
      %367 = vmatpush1.msra.mxu0 0.0
      %368 = vmatprep.subr.mxu0 0.0
      %369 = vmatpush1.msra.mxu0 0.0
      %370 = vmatprep.subr.mxu0 0.0
      %371 = vmatpush1.msra.mxu0 0.0
      %372 = vmatprep.subr.mxu0 0.0
      %373 = vmatpush1.msra.mxu0 0.0
      %374 = vmatprep.subr.mxu0 0.0
      %375 = vmatpush1.msra.mxu0 0.0
      %376 = vmatprep.subr.mxu0 0.0
      %377 = vmatpush1.msra.mxu0 0.0
      %378 = vmatprep.subr.mxu0 0.0
      %379 = vmatpush1.msra.mxu0 0.0
      %380 = vmatprep.subr.mxu0 0.0
      %381 = vmatpush1.msra.mxu0 0.0
      %382 = vmatprep.subr.mxu0 0.0
      %383 = vmatpush1.msra.mxu0 0.0
      %384 = vmatprep.subr.mxu0 0.0
      %385 = vmatpush1.msra.mxu0 0.0
      %386 = vmatprep.subr.mxu0 0.0
      %387 = vmatpush1.msra.mxu0 0.0
      %388 = vmatprep.subr.mxu0 0.0
      %389 = vmatpush1.msra.mxu0 0.0
      %390 = vmatprep.subr.mxu0 0.0
      %391 = vmatpush1.msra.mxu0 0.0
      %392 = vmatprep.subr.mxu0 0.0
      %393 = vmatpush1.msra.mxu0 0.0
      %394 = vmatprep.subr.mxu0 0.0
      %395 = vmatpush1.msra.mxu0 0.0
      %396 = vmatprep.subr.mxu0 0.0
      %397 = vmatpush1.msra.mxu0 0.0
      %398 = vmatprep.subr.mxu0 0.0
      %399 = vmatpush1.msra.mxu0 0.0
      %400 = vmatprep.subr.mxu0 0.0
      %401 = vmatpush1.msra.mxu0 0.0
      %402 = vmatprep.subr.mxu0 0.0
      %403 = vmatpush1.msra.mxu0 0.0
      %404 = vmatprep.mubr.f32.mxu0 0.0
      %v405 = vand.u32 %v184, 4294901760
      %v406 = vsub.f32 %v184, %v405
      %407 = vmatmul.mubr.f32.gmra.mrb[0].mxu0 %v406
      %v408 = vpop.f32.mrb[0].mxu0
      %v409 = vadd.f32 %v335, %v408
      %v410 = vpop.f32.mrb[0].mxu0
      %411 = vdwg.mxu0
      %412 = vmatprep.subr.mxu0 0.0
      %v413 = vand.u32 %v181, 4294901760
      %414 = vmatpush1.msra.mxu0 %v413
      %415 = vmatprep.subr.mxu0 0.0
      %416 = vmatpush1.msra.mxu0 0.0
      %417 = vmatprep.subr.mxu0 0.0
      %418 = vmatpush1.msra.mxu0 0.0
      %419 = vmatprep.subr.mxu0 0.0
      %420 = vmatpush1.msra.mxu0 0.0
      %421 = vmatprep.subr.mxu0 0.0
      %422 = vmatpush1.msra.mxu0 0.0
      %423 = vmatprep.subr.mxu0 0.0
      %424 = vmatpush1.msra.mxu0 0.0
      %425 = vmatprep.subr.mxu0 0.0
      %426 = vmatpush1.msra.mxu0 0.0
      %427 = vmatprep.subr.mxu0 0.0
      %428 = vmatpush1.msra.mxu0 0.0
      %429 = vmatprep.subr.mxu0 0.0
      %430 = vmatpush1.msra.mxu0 0.0
      %431 = vmatprep.subr.mxu0 0.0
      %432 = vmatpush1.msra.mxu0 0.0
      %433 = vmatprep.subr.mxu0 0.0
      %434 = vmatpush1.msra.mxu0 0.0
      %435 = vmatprep.subr.mxu0 0.0
      %436 = vmatpush1.msra.mxu0 0.0
      %437 = vmatprep.subr.mxu0 0.0
      %438 = vmatpush1.msra.mxu0 0.0
      %439 = vmatprep.subr.mxu0 0.0
      %440 = vmatpush1.msra.mxu0 0.0
      %441 = vmatprep.subr.mxu0 0.0
      %442 = vmatpush1.msra.mxu0 0.0
      %443 = vmatprep.subr.mxu0 0.0
      %444 = vmatpush1.msra.mxu0 0.0
      %445 = vmatprep.subr.mxu0 0.0
      %446 = vmatpush1.msra.mxu0 0.0
      %447 = vmatprep.subr.mxu0 0.0
      %448 = vmatpush1.msra.mxu0 0.0
      %449 = vmatprep.subr.mxu0 0.0
      %450 = vmatpush1.msra.mxu0 0.0
      %451 = vmatprep.subr.mxu0 0.0
      %452 = vmatpush1.msra.mxu0 0.0
      %453 = vmatprep.subr.mxu0 0.0
      %454 = vmatpush1.msra.mxu0 0.0
      %455 = vmatprep.subr.mxu0 0.0
      %456 = vmatpush1.msra.mxu0 0.0
      %457 = vmatprep.subr.mxu0 0.0
      %458 = vmatpush1.msra.mxu0 0.0
      %459 = vmatprep.subr.mxu0 0.0
      %460 = vmatpush1.msra.mxu0 0.0
      %461 = vmatprep.subr.mxu0 0.0
      %462 = vmatpush1.msra.mxu0 0.0
      %463 = vmatprep.subr.mxu0 0.0
      %464 = vmatpush1.msra.mxu0 0.0
      %465 = vmatprep.subr.mxu0 0.0
      %466 = vmatpush1.msra.mxu0 0.0
      %467 = vmatprep.subr.mxu0 0.0
      %468 = vmatpush1.msra.mxu0 0.0
      %469 = vmatprep.subr.mxu0 0.0
      %470 = vmatpush1.msra.mxu0 0.0
      %471 = vmatprep.subr.mxu0 0.0
      %472 = vmatpush1.msra.mxu0 0.0
      %473 = vmatprep.subr.mxu0 0.0
      %474 = vmatpush1.msra.mxu0 0.0
      %475 = vmatprep.subr.mxu0 0.0
      %476 = vmatpush1.msra.mxu0 0.0
      %477 = vmatprep.mubr.f32.mxu0 0.0
      %v478 = vand.u32 %v184, 4294901760
      %v479 = vsub.f32 %v184, %v478
      %v480 = vand.u32 %v479, 4294901760
      %481 = vmatmul.mubr.f32.gmra.mrb[0].mxu0 %v480
      %v482 = vpop.f32.mrb[0].mxu0
      %v483 = vadd.f32 %v409, %v482
      %v484 = vpop.f32.mrb[0].mxu0
      %485 = vdwg.mxu0
      %486 = vmatprep.subr.mxu0 0.0
      %v487 = vand.u32 %v181, 4294901760
      %v488 = vsub.f32 %v181, %v487
      %v489 = vand.u32 %v488, 4294901760
      %490 = vmatpush1.msra.mxu0 %v489
      %491 = vmatprep.subr.mxu0 0.0
      %492 = vmatpush1.msra.mxu0 0.0
      %493 = vmatprep.subr.mxu0 0.0
      %494 = vmatpush1.msra.mxu0 0.0
      %495 = vmatprep.subr.mxu0 0.0
      %496 = vmatpush1.msra.mxu0 0.0
      %497 = vmatprep.subr.mxu0 0.0
      %498 = vmatpush1.msra.mxu0 0.0
      %499 = vmatprep.subr.mxu0 0.0
      %500 = vmatpush1.msra.mxu0 0.0
      %501 = vmatprep.subr.mxu0 0.0
      %502 = vmatpush1.msra.mxu0 0.0
      %503 = vmatprep.subr.mxu0 0.0
      %504 = vmatpush1.msra.mxu0 0.0
      %505 = vmatprep.subr.mxu0 0.0
      %506 = vmatpush1.msra.mxu0 0.0
      %507 = vmatprep.subr.mxu0 0.0
      %508 = vmatpush1.msra.mxu0 0.0
      %509 = vmatprep.subr.mxu0 0.0
      %510 = vmatpush1.msra.mxu0 0.0
      %511 = vmatprep.subr.mxu0 0.0
      %512 = vmatpush1.msra.mxu0 0.0
      %513 = vmatprep.subr.mxu0 0.0
      %514 = vmatpush1.msra.mxu0 0.0
      %515 = vmatprep.subr.mxu0 0.0
      %516 = vmatpush1.msra.mxu0 0.0
      %517 = vmatprep.subr.mxu0 0.0
      %518 = vmatpush1.msra.mxu0 0.0
      %519 = vmatprep.subr.mxu0 0.0
      %520 = vmatpush1.msra.mxu0 0.0
      %521 = vmatprep.subr.mxu0 0.0
      %522 = vmatpush1.msra.mxu0 0.0
      %523 = vmatprep.subr.mxu0 0.0
      %524 = vmatpush1.msra.mxu0 0.0
      %525 = vmatprep.subr.mxu0 0.0
      %526 = vmatpush1.msra.mxu0 0.0
      %527 = vmatprep.subr.mxu0 0.0
      %528 = vmatpush1.msra.mxu0 0.0
      %529 = vmatprep.subr.mxu0 0.0
      %530 = vmatpush1.msra.mxu0 0.0
      %531 = vmatprep.subr.mxu0 0.0
      %532 = vmatpush1.msra.mxu0 0.0
      %533 = vmatprep.subr.mxu0 0.0
      %534 = vmatpush1.msra.mxu0 0.0
      %535 = vmatprep.subr.mxu0 0.0
      %536 = vmatpush1.msra.mxu0 0.0
      %537 = vmatprep.subr.mxu0 0.0
      %538 = vmatpush1.msra.mxu0 0.0
      %539 = vmatprep.subr.mxu0 0.0
      %540 = vmatpush1.msra.mxu0 0.0
      %541 = vmatprep.subr.mxu0 0.0
      %542 = vmatpush1.msra.mxu0 0.0
      %543 = vmatprep.subr.mxu0 0.0
      %544 = vmatpush1.msra.mxu0 0.0
      %545 = vmatprep.subr.mxu0 0.0
      %546 = vmatpush1.msra.mxu0 0.0
      %547 = vmatprep.subr.mxu0 0.0
      %548 = vmatpush1.msra.mxu0 0.0
      %549 = vmatprep.subr.mxu0 0.0
      %550 = vmatpush1.msra.mxu0 0.0
      %551 = vmatprep.subr.mxu0 0.0
      %552 = vmatpush1.msra.mxu0 0.0
      %553 = vmatprep.mubr.f32.mxu0 0.0
      %v554 = vand.u32 %v184, 4294901760
      %555 = vmatmul.mubr.f32.gmra.mrb[0].mxu0 %v554
      %v556 = vpop.f32.mrb[0].mxu0
      %v557 = vadd.f32 %v483, %v556
      %v558 = vpop.f32.mrb[0].mxu0
      %559 = vdwg.mxu0
      %560 = vmatprep.subr.mxu0 0.0
      %v561 = vand.u32 %v181, 4294901760
      %562 = vmatpush1.msra.mxu0 %v561
      %563 = vmatprep.subr.mxu0 0.0
      %564 = vmatpush1.msra.mxu0 0.0
      %565 = vmatprep.subr.mxu0 0.0
      %566 = vmatpush1.msra.mxu0 0.0
      %567 = vmatprep.subr.mxu0 0.0
      %568 = vmatpush1.msra.mxu0 0.0
      %569 = vmatprep.subr.mxu0 0.0
      %570 = vmatpush1.msra.mxu0 0.0
      %571 = vmatprep.subr.mxu0 0.0
      %572 = vmatpush1.msra.mxu0 0.0
      %573 = vmatprep.subr.mxu0 0.0
      %574 = vmatpush1.msra.mxu0 0.0
      %575 = vmatprep.subr.mxu0 0.0
      %576 = vmatpush1.msra.mxu0 0.0
      %577 = vmatprep.subr.mxu0 0.0
      %578 = vmatpush1.msra.mxu0 0.0
      %579 = vmatprep.subr.mxu0 0.0
      %580 = vmatpush1.msra.mxu0 0.0
      %581 = vmatprep.subr.mxu0 0.0
      %582 = vmatpush1.msra.mxu0 0.0
      %583 = vmatprep.subr.mxu0 0.0
      %584 = vmatpush1.msra.mxu0 0.0
      %585 = vmatprep.subr.mxu0 0.0
      %586 = vmatpush1.msra.mxu0 0.0
      %587 = vmatprep.subr.mxu0 0.0
      %588 = vmatpush1.msra.mxu0 0.0
      %589 = vmatprep.subr.mxu0 0.0
      %590 = vmatpush1.msra.mxu0 0.0
      %591 = vmatprep.subr.mxu0 0.0
      %592 = vmatpush1.msra.mxu0 0.0
      %593 = vmatprep.subr.mxu0 0.0
      %594 = vmatpush1.msra.mxu0 0.0
      %595 = vmatprep.subr.mxu0 0.0
      %596 = vmatpush1.msra.mxu0 0.0
      %597 = vmatprep.subr.mxu0 0.0
      %598 = vmatpush1.msra.mxu0 0.0
      %599 = vmatprep.subr.mxu0 0.0
      %600 = vmatpush1.msra.mxu0 0.0
      %601 = vmatprep.subr.mxu0 0.0
      %602 = vmatpush1.msra.mxu0 0.0
      %603 = vmatprep.subr.mxu0 0.0
      %604 = vmatpush1.msra.mxu0 0.0
      %605 = vmatprep.subr.mxu0 0.0
      %606 = vmatpush1.msra.mxu0 0.0
      %607 = vmatprep.subr.mxu0 0.0
      %608 = vmatpush1.msra.mxu0 0.0
      %609 = vmatprep.subr.mxu0 0.0
      %610 = vmatpush1.msra.mxu0 0.0
      %611 = vmatprep.subr.mxu0 0.0
      %612 = vmatpush1.msra.mxu0 0.0
      %613 = vmatprep.subr.mxu0 0.0
      %614 = vmatpush1.msra.mxu0 0.0
      %615 = vmatprep.subr.mxu0 0.0
      %616 = vmatpush1.msra.mxu0 0.0
      %617 = vmatprep.subr.mxu0 0.0
      %618 = vmatpush1.msra.mxu0 0.0
      %619 = vmatprep.subr.mxu0 0.0
      %620 = vmatpush1.msra.mxu0 0.0
      %621 = vmatprep.subr.mxu0 0.0
      %622 = vmatpush1.msra.mxu0 0.0
      %623 = vmatprep.subr.mxu0 0.0
      %624 = vmatpush1.msra.mxu0 0.0
      %625 = vmatprep.mubr.f32.mxu0 0.0
      %v626 = vand.u32 %v184, 4294901760
      %627 = vmatmul.mubr.f32.gmra.mrb[0].mxu0 %v626
      %v628 = vpop.f32.mrb[0].mxu0
      %v629 = vadd.f32 %v557, %v628
      %v630 = vpop.f32.mrb[0].mxu0
      %631 = vdwg.mxu0
      %v632 = vmul.f32 %v178, %v629
      %v633 = vsub.f32 %v632, %v174
      %v634 = vsub.f32 7.0, %v633
      %v635 = vmul.f32 %v634, -0.071428575
      %v636 = vadd.f32 %v175, %v635
      %638 = vset.pattern.permute.xlu0 0
      %639 = vperm.xlu0 %638, %v636
      %v640 = vpop.permute.xlu0 %639
      %v641 = vlaneseq
      %v642 = vand.u32 %v641, 127
      %v643 = vlaneseq
      %v644 = vshrl.u32 %v643, 7
      %v645 = vsub.s32 %v642, %v644
      %v646 = vrot.slane %v640, %v645
      %649 = vset.pattern.permute.xlu0 0
      %650 = vperm.xlu0 %649, %v175
      %v651 = vpop.permute.xlu0 %650
      %v652 = vlaneseq
      %v653 = vshrl.u32 %v652, 7
      %v654 = vsub.s32 %v642, %v653
      %v655 = vrot.slane %v651, %v654
      %658 = vset.pattern.permute.xlu0 0
      %659 = vperm.xlu0 %658, %v635
      %v660 = vpop.permute.xlu0 %659
      %v661 = vlaneseq
      %v662 = vshrl.u32 %v661, 7
      %v663 = vsub.s32 %v642, %v662
      %v664 = vrot.slane %v660, %v663
      %vm666 = vcmask 1040384
      %v667 = vsel %vm666, %v646, %v655
      %vm668 = vcmask 1041408
      %v669 = vsel %vm668, %v667, %v664
      %vm670 = vcmask 59392
      %671 = vst.msk [vmem:[#allocation11] sm:$0x7] %vm670, %v669
    $region25: #{tpu_custom_call.1} parent=1 // pred_fallthru
      _
    // Predicated region
    $region26: #{tpu_custom_call.1} parent=1 // pred_check
      _
    $region27: #{tpu_custom_call.1} parent=1 // pred_check_branch
      %673 = sbr.rel (0) target = $region29
    $region28: #{tpu_custom_call.1} parent=1 // pred_region
      %s675 = ssub.s32 64, 64
      %676 = vsyncadd [#allocation8], %s675
      %s678 = sshll.u32 [#allocation11], 4
      %s679 = int_to_ptr.vmem [resolvable:$true] %s678
      %681 = dma.vmem_to_hbm [thread:$0]  %s679, 64, %s2, [#allocation8]
    $region29: #{tpu_custom_call.1} parent=1 // pred_fallthru
      _
    // Predicated region
    $region30: #{tpu_custom_call.1} parent=1 // pred_check
      _
    $region31: #{tpu_custom_call.1} parent=1 // pred_check_branch
      %683 = sbr.rel (0) target = $region33
    $region32: #{tpu_custom_call.1} parent=1 // pred_region
      %684 = dma.done [#allocation8], 64
    $region33: #{tpu_custom_call.1} parent=1 // pred_fallthru
      _
    %685 = vsyncpa [#allocation7], 1
    %686 = vsyncpa [#allocation10], 1
    %687 = vsyncpa [#allocation8], 1

</llo_original>
